<compile_context>
chip_gen: v7x
topology: tpu7x:2x2x1
jax: 0.10.0
libtpu: 0.0.40
codegen_flags: <defaults>
</compile_context>

<pallas_src>
from functools import partial

import jax
import jax.numpy as jnp
from jax.experimental import pallas as pl
from jax.experimental.pallas import tpu as pltpu

KERNEL_SIZE = 3          # Conv1d kernel_size=3, padding=1
_VPU_KC_MAX = 32         # use the VPU MAC path when K * C_in <= this (MXU K-starved)


def _make_kernel(L, C_in, C_out, use_vpu):
    """Fused conv+bias+ReLU kernel; one batch element (L, C_in) per grid step."""
    K = KERNEL_SIZE

    def _taps(x):
        # x: (L, C_in).  tap_k[l] == x_pad[l + k] where x_pad has one zero row
        # on each side (Conv1d padding=1) -- built in VMEM from shifted slices.
        zero = jnp.zeros((1, C_in), x.dtype)
        left = jnp.concatenate([zero, x[:L - 1, :]], axis=0)     # x[l-1]
        right = jnp.concatenate([x[1:, :], zero], axis=0)        # x[l+1]
        return (left, x, right)

    if use_vpu:
        # K*C_in is tiny: fill <5% of the MXU's K depth -> do K*C_in unrolled
        # broadcast multiply-adds on the VPU instead.
        def kernel(x_ref, w_ref, b_ref, o_ref):
            x = x_ref[...].astype(jnp.float32)                   # (L, C_in)
            w = w_ref[...].astype(jnp.float32)                   # (K, C_in, C_out)
            taps = _taps(x)
            acc = jnp.zeros((L, C_out), jnp.float32)
            for k in range(K):
                for c in range(C_in):
                    acc = acc + taps[k][:, c:c + 1] * w[k, c:c + 1, :]
            acc = acc + b_ref[...]
            o_ref[...] = jnp.maximum(acc, 0.0).astype(o_ref.dtype)
    else:
        # Larger C_in: 3 K-sliced MXU dots accumulated in f32.
        def kernel(x_ref, w_ref, b_ref, o_ref):
            x = x_ref[...]                                       # (L, C_in)
            taps = _taps(x)
            prec = (jax.lax.Precision.HIGHEST
                    if x.dtype == jnp.float32 else jax.lax.Precision.DEFAULT)
            acc = jnp.zeros((L, C_out), jnp.float32)
            for k in range(K):
                acc = acc + jnp.dot(taps[k], w_ref[k], precision=prec,
                                    preferred_element_type=jnp.float32)
            acc = acc + b_ref[...]
            o_ref[...] = jnp.maximum(acc, 0.0).astype(o_ref.dtype)

    return kernel


@partial(jax.jit, static_argnames=("compute_dtype",))
def cnn_feature_extractor(x, weight, bias, *, compute_dtype=None):
    """Fused Conv1d(k=3, pad=1) + bias + ReLU (+ eval-mode Dropout = identity).

    x:      (B, L, C_in)    channels-last (the module's permutes are folded in)
    weight: (K, C_in, C_out)
    bias:   (C_out,)
    compute_dtype: optional MXU input dtype (e.g. jnp.bfloat16 on v6e/v7x);
                   accumulation, bias add and ReLU stay in f32.
    Returns (B, L, C_out).
    """
    B, L, C_in = x.shape
    K, _, C_out = weight.shape
    assert K == KERNEL_SIZE

    out_dtype = x.dtype
    if compute_dtype is not None:
        x = x.astype(compute_dtype)
        weight = weight.astype(compute_dtype)
    bias_row = bias.astype(jnp.float32).reshape(1, C_out)

    use_vpu = (K * C_in) <= _VPU_KC_MAX
    kernel = _make_kernel(L, C_in, C_out, use_vpu)

    bytes_accessed = (x.size * x.dtype.itemsize
                      + weight.size * weight.dtype.itemsize
                      + bias_row.size * bias_row.dtype.itemsize
                      + B * L * C_out * out_dtype.itemsize)
    cost = pl.CostEstimate(flops=2 * B * L * K * C_in * C_out,
                           transcendentals=0,
                           bytes_accessed=int(bytes_accessed))

    return pl.pallas_call(
        kernel,
        out_shape=jax.ShapeDtypeStruct((B, L, C_out), out_dtype),
        grid_spec=pltpu.PrefetchScalarGridSpec(
            num_scalar_prefetch=0,
            grid=(B,),
            in_specs=[
                # raw activations: one (L, C_in) tile per batch element
                pl.BlockSpec((None, L, C_in), lambda b: (b, 0, 0)),
                # weight / bias: constant index map -> DMA'd once, stays resident
                pl.BlockSpec((K, C_in, C_out), lambda b: (0, 0, 0)),
                pl.BlockSpec((1, C_out), lambda b: (0, 0)),
            ],
            out_specs=pl.BlockSpec((None, L, C_out), lambda b: (b, 0, 0)),
        ),
        compiler_params=pltpu.CompilerParams(
            dimension_semantics=("parallel",),
        ),
        cost_estimate=cost,
    )(x, weight, bias_row)


def init_params(key, c_in, c_out):
    """Matches the module init: kaiming_normal_(relu) on Conv1d weight, zero bias.
    Torch weight is (C_out, C_in, K); returned layout is (K, C_in, C_out)."""
    fan_in = c_in * KERNEL_SIZE
    std = (2.0 / fan_in) ** 0.5
    w_torch = jax.random.normal(key, (c_out, c_in, KERNEL_SIZE), jnp.float32) * std
    w_kernel = jnp.transpose(w_torch, (2, 1, 0))          # (K, C_in, C_out)
    b = jnp.zeros((c_out,), jnp.float32)
    return w_kernel, b


def reference(x, weight, bias):
    """Pure-JAX reference of the module forward (eval mode)."""
    B, L, _ = x.shape
    K, _, C_out = weight.shape
    x_pad = jnp.pad(x, ((0, 0), (1, 1), (0, 0)))
    out = jnp.zeros((B, L, C_out), jnp.float32)
    for k in range(K):
        out = out + jnp.einsum("blc,co->blo", x_pad[:, k:k + L, :], weight[k],
                               precision=jax.lax.Precision.HIGHEST)
    out = out + bias[None, None, :]
    return jnp.maximum(out, 0.0)


if __name__ == "__main__":
    key = jax.random.PRNGKey(0)
    k_x1, k_w1, k_x2, k_w2 = jax.random.split(key, 4)

    # --- config 1: module-like shapes (features=4, cnn_out_channels=32) -------
    # tiny C_in -> unrolled VPU broadcast-MAC path
    B, L, C_in, C_out = 2, 8, 4, 32
    x = jax.random.normal(k_x1, (B, L, C_in), dtype=jnp.float32)
    weight, bias = init_params(k_w1, C_in, C_out)

    out = jax.block_until_ready(cnn_feature_extractor(x, weight, bias))
    ref = reference(x, weight, bias)
    assert out.shape == (B, L, C_out), out.shape
    assert jnp.allclose(out, ref, atol=1e-5, rtol=1e-5), "f32 VPU path mismatch"

    # bf16 operands (v6e/v7x bf16-native MXU / halved input DMA bytes)
    out_bf16 = jax.block_until_ready(
        cnn_feature_extractor(x, weight, bias, compute_dtype=jnp.bfloat16))
    assert out_bf16.shape == (B, L, C_out)
    assert float(jnp.max(jnp.abs(out_bf16 - ref))) < 0.25, "bf16 path mismatch"

    # --- config 2: larger C_in -> MXU (3 K-sliced dots) path -------------------
    B2, L2, C2_in, C2_out = 2, 16, 64, 128
    x2 = jax.random.normal(k_x2, (B2, L2, C2_in), dtype=jnp.float32)
    w2, b2 = init_params(k_w2, C2_in, C2_out)
    out2 = jax.block_until_ready(cnn_feature_extractor(x2, w2, b2))
    ref2 = reference(x2, w2, b2)
    assert out2.shape == (B2, L2, C2_out), out2.shape
    assert jnp.allclose(out2, ref2, atol=1e-4, rtol=1e-4), "f32 MXU path mismatch"

    print("KERNEL_OK")
</pallas_src>

<mosaic_0001>
module attributes {stable_mosaic.version = 11 : i64} {
  func.func @kernel(%arg0: i32, %arg1: memref<1x8x4xf32, #tpu.memory_space<vmem>>, %arg2: memref<3x4x32xf32, #tpu.memory_space<vmem>>, %arg3: memref<1x32xf32, #tpu.memory_space<vmem>>, %arg4: memref<1x8x32xf32, #tpu.memory_space<vmem>>) attributes {dimension_semantics = [#tpu.dimension_semantics<parallel>], iteration_bounds = array<i64: 2>, scalar_prefetch = 0 : i64, scratch_operands = 0 : i64, tpu.core_type = #tpu.core_type<tc>, window_params = [{transform_indices = @transform_0, window_bounds = array<i64: 1, 8, 4>}, {pipeline_mode = #tpu.pipeline_mode<synchronous>, transform_indices = @transform_1, window_bounds = array<i64: 3, 4, 32>}, {pipeline_mode = #tpu.pipeline_mode<synchronous>, transform_indices = @transform_2, window_bounds = array<i64: 1, 32>}, {transform_indices = @transform_3, window_bounds = array<i64: 1, 8, 32>}]} {
    %c0 = arith.constant 0 : index
    %c0_0 = arith.constant 0 : index
    %c0_1 = arith.constant 0 : index
    %0 = vector.load %arg1[%c0, %c0_0, %c0_1] : memref<1x8x4xf32, #tpu.memory_space<vmem>>, vector<1x8x4xf32>
    %1 = vector.shape_cast %0 : vector<1x8x4xf32> to vector<8x4xf32>
    %c0_2 = arith.constant 0 : index
    %c0_3 = arith.constant 0 : index
    %c0_4 = arith.constant 0 : index
    %2 = vector.load %arg2[%c0_2, %c0_3, %c0_4] : memref<3x4x32xf32, #tpu.memory_space<vmem>>, vector<3x4x32xf32>
    %cst = arith.constant 0.000000e+00 : f32
    %3 = vector.broadcast %cst : f32 to vector<1x4xf32>
    %4 = vector.extract_strided_slice %1 {offsets = [0, 0], sizes = [7, 4], strides = [1, 1]} : vector<8x4xf32> to vector<7x4xf32>
    %5 = tpu.concatenate %3, %4 in 0 : vector<1x4xf32>, vector<7x4xf32> -> vector<8x4xf32>
    %6 = vector.extract_strided_slice %1 {offsets = [1, 0], sizes = [7, 4], strides = [1, 1]} : vector<8x4xf32> to vector<7x4xf32>
    %7 = tpu.concatenate %6, %3 in 0 : vector<7x4xf32>, vector<1x4xf32> -> vector<8x4xf32>
    %cst_5 = arith.constant 0.000000e+00 : f32
    %8 = vector.broadcast %cst_5 : f32 to vector<8x32xf32>
    %9 = vector.extract_strided_slice %5 {offsets = [0, 0], sizes = [8, 1], strides = [1, 1]} : vector<8x4xf32> to vector<8x1xf32>
    %10 = vector.extract_strided_slice %2 {offsets = [0, 0, 0], sizes = [1, 1, 32], strides = [1, 1, 1]} : vector<3x4x32xf32> to vector<1x1x32xf32>
    %11 = vector.shape_cast %10 : vector<1x1x32xf32> to vector<1x32xf32>
    %12 = vector.broadcast %9 : vector<8x1xf32> to vector<8x32xf32>
    %13 = vector.broadcast %11 : vector<1x32xf32> to vector<8x32xf32>
    %14 = arith.mulf %12, %13 : vector<8x32xf32>
    %15 = arith.addf %8, %14 : vector<8x32xf32>
    %16 = vector.extract_strided_slice %5 {offsets = [0, 1], sizes = [8, 1], strides = [1, 1]} : vector<8x4xf32> to vector<8x1xf32>
    %17 = vector.extract_strided_slice %2 {offsets = [0, 1, 0], sizes = [1, 1, 32], strides = [1, 1, 1]} : vector<3x4x32xf32> to vector<1x1x32xf32>
    %18 = vector.shape_cast %17 : vector<1x1x32xf32> to vector<1x32xf32>
    %19 = vector.broadcast %16 : vector<8x1xf32> to vector<8x32xf32>
    %20 = vector.broadcast %18 : vector<1x32xf32> to vector<8x32xf32>
    %21 = arith.mulf %19, %20 : vector<8x32xf32>
    %22 = arith.addf %15, %21 : vector<8x32xf32>
    %23 = vector.extract_strided_slice %5 {offsets = [0, 2], sizes = [8, 1], strides = [1, 1]} : vector<8x4xf32> to vector<8x1xf32>
    %24 = vector.extract_strided_slice %2 {offsets = [0, 2, 0], sizes = [1, 1, 32], strides = [1, 1, 1]} : vector<3x4x32xf32> to vector<1x1x32xf32>
    %25 = vector.shape_cast %24 : vector<1x1x32xf32> to vector<1x32xf32>
    %26 = vector.broadcast %23 : vector<8x1xf32> to vector<8x32xf32>
    %27 = vector.broadcast %25 : vector<1x32xf32> to vector<8x32xf32>
    %28 = arith.mulf %26, %27 : vector<8x32xf32>
    %29 = arith.addf %22, %28 : vector<8x32xf32>
    %30 = vector.extract_strided_slice %5 {offsets = [0, 3], sizes = [8, 1], strides = [1, 1]} : vector<8x4xf32> to vector<8x1xf32>
    %31 = vector.extract_strided_slice %2 {offsets = [0, 3, 0], sizes = [1, 1, 32], strides = [1, 1, 1]} : vector<3x4x32xf32> to vector<1x1x32xf32>
    %32 = vector.shape_cast %31 : vector<1x1x32xf32> to vector<1x32xf32>
    %33 = vector.broadcast %30 : vector<8x1xf32> to vector<8x32xf32>
    %34 = vector.broadcast %32 : vector<1x32xf32> to vector<8x32xf32>
    %35 = arith.mulf %33, %34 : vector<8x32xf32>
    %36 = arith.addf %29, %35 : vector<8x32xf32>
    %37 = vector.extract_strided_slice %1 {offsets = [0, 0], sizes = [8, 1], strides = [1, 1]} : vector<8x4xf32> to vector<8x1xf32>
    %38 = vector.extract_strided_slice %2 {offsets = [1, 0, 0], sizes = [1, 1, 32], strides = [1, 1, 1]} : vector<3x4x32xf32> to vector<1x1x32xf32>
    %39 = vector.shape_cast %38 : vector<1x1x32xf32> to vector<1x32xf32>
    %40 = vector.broadcast %37 : vector<8x1xf32> to vector<8x32xf32>
    %41 = vector.broadcast %39 : vector<1x32xf32> to vector<8x32xf32>
    %42 = arith.mulf %40, %41 : vector<8x32xf32>
    %43 = arith.addf %36, %42 : vector<8x32xf32>
    %44 = vector.extract_strided_slice %1 {offsets = [0, 1], sizes = [8, 1], strides = [1, 1]} : vector<8x4xf32> to vector<8x1xf32>
    %45 = vector.extract_strided_slice %2 {offsets = [1, 1, 0], sizes = [1, 1, 32], strides = [1, 1, 1]} : vector<3x4x32xf32> to vector<1x1x32xf32>
    %46 = vector.shape_cast %45 : vector<1x1x32xf32> to vector<1x32xf32>
    %47 = vector.broadcast %44 : vector<8x1xf32> to vector<8x32xf32>
    %48 = vector.broadcast %46 : vector<1x32xf32> to vector<8x32xf32>
    %49 = arith.mulf %47, %48 : vector<8x32xf32>
    %50 = arith.addf %43, %49 : vector<8x32xf32>
    %51 = vector.extract_strided_slice %1 {offsets = [0, 2], sizes = [8, 1], strides = [1, 1]} : vector<8x4xf32> to vector<8x1xf32>
    %52 = vector.extract_strided_slice %2 {offsets = [1, 2, 0], sizes = [1, 1, 32], strides = [1, 1, 1]} : vector<3x4x32xf32> to vector<1x1x32xf32>
    %53 = vector.shape_cast %52 : vector<1x1x32xf32> to vector<1x32xf32>
    %54 = vector.broadcast %51 : vector<8x1xf32> to vector<8x32xf32>
    %55 = vector.broadcast %53 : vector<1x32xf32> to vector<8x32xf32>
    %56 = arith.mulf %54, %55 : vector<8x32xf32>
    %57 = arith.addf %50, %56 : vector<8x32xf32>
    %58 = vector.extract_strided_slice %1 {offsets = [0, 3], sizes = [8, 1], strides = [1, 1]} : vector<8x4xf32> to vector<8x1xf32>
    %59 = vector.extract_strided_slice %2 {offsets = [1, 3, 0], sizes = [1, 1, 32], strides = [1, 1, 1]} : vector<3x4x32xf32> to vector<1x1x32xf32>
    %60 = vector.shape_cast %59 : vector<1x1x32xf32> to vector<1x32xf32>
    %61 = vector.broadcast %58 : vector<8x1xf32> to vector<8x32xf32>
    %62 = vector.broadcast %60 : vector<1x32xf32> to vector<8x32xf32>
    %63 = arith.mulf %61, %62 : vector<8x32xf32>
    %64 = arith.addf %57, %63 : vector<8x32xf32>
    %65 = vector.extract_strided_slice %7 {offsets = [0, 0], sizes = [8, 1], strides = [1, 1]} : vector<8x4xf32> to vector<8x1xf32>
    %66 = vector.extract_strided_slice %2 {offsets = [2, 0, 0], sizes = [1, 1, 32], strides = [1, 1, 1]} : vector<3x4x32xf32> to vector<1x1x32xf32>
    %67 = vector.shape_cast %66 : vector<1x1x32xf32> to vector<1x32xf32>
    %68 = vector.broadcast %65 : vector<8x1xf32> to vector<8x32xf32>
    %69 = vector.broadcast %67 : vector<1x32xf32> to vector<8x32xf32>
    %70 = arith.mulf %68, %69 : vector<8x32xf32>
    %71 = arith.addf %64, %70 : vector<8x32xf32>
    %72 = vector.extract_strided_slice %7 {offsets = [0, 1], sizes = [8, 1], strides = [1, 1]} : vector<8x4xf32> to vector<8x1xf32>
    %73 = vector.extract_strided_slice %2 {offsets = [2, 1, 0], sizes = [1, 1, 32], strides = [1, 1, 1]} : vector<3x4x32xf32> to vector<1x1x32xf32>
    %74 = vector.shape_cast %73 : vector<1x1x32xf32> to vector<1x32xf32>
    %75 = vector.broadcast %72 : vector<8x1xf32> to vector<8x32xf32>
    %76 = vector.broadcast %74 : vector<1x32xf32> to vector<8x32xf32>
    %77 = arith.mulf %75, %76 : vector<8x32xf32>
    %78 = arith.addf %71, %77 : vector<8x32xf32>
    %79 = vector.extract_strided_slice %7 {offsets = [0, 2], sizes = [8, 1], strides = [1, 1]} : vector<8x4xf32> to vector<8x1xf32>
    %80 = vector.extract_strided_slice %2 {offsets = [2, 2, 0], sizes = [1, 1, 32], strides = [1, 1, 1]} : vector<3x4x32xf32> to vector<1x1x32xf32>
    %81 = vector.shape_cast %80 : vector<1x1x32xf32> to vector<1x32xf32>
    %82 = vector.broadcast %79 : vector<8x1xf32> to vector<8x32xf32>
    %83 = vector.broadcast %81 : vector<1x32xf32> to vector<8x32xf32>
    %84 = arith.mulf %82, %83 : vector<8x32xf32>
    %85 = arith.addf %78, %84 : vector<8x32xf32>
    %86 = vector.extract_strided_slice %7 {offsets = [0, 3], sizes = [8, 1], strides = [1, 1]} : vector<8x4xf32> to vector<8x1xf32>
    %87 = vector.extract_strided_slice %2 {offsets = [2, 3, 0], sizes = [1, 1, 32], strides = [1, 1, 1]} : vector<3x4x32xf32> to vector<1x1x32xf32>
    %88 = vector.shape_cast %87 : vector<1x1x32xf32> to vector<1x32xf32>
    %89 = vector.broadcast %86 : vector<8x1xf32> to vector<8x32xf32>
    %90 = vector.broadcast %88 : vector<1x32xf32> to vector<8x32xf32>
    %91 = arith.mulf %89, %90 : vector<8x32xf32>
    %92 = arith.addf %85, %91 : vector<8x32xf32>
    %c0_6 = arith.constant 0 : index
    %c0_7 = arith.constant 0 : index
    %93 = vector.load %arg3[%c0_6, %c0_7] : memref<1x32xf32, #tpu.memory_space<vmem>>, vector<1x32xf32>
    %94 = vector.broadcast %93 : vector<1x32xf32> to vector<8x32xf32>
    %95 = arith.addf %92, %94 : vector<8x32xf32>
    %cst_8 = arith.constant 0.000000e+00 : f32
    %96 = vector.broadcast %cst_8 : f32 to vector<8x32xf32>
    %97 = arith.maximumf %95, %96 : vector<8x32xf32>
    %c0_9 = arith.constant 0 : index
    %c0_10 = arith.constant 0 : index
    %c0_11 = arith.constant 0 : index
    %98 = vector.load %arg4[%c0_9, %c0_10, %c0_11] : memref<1x8x32xf32, #tpu.memory_space<vmem>>, vector<1x8x32xf32>
    %99 = vector.shape_cast %98 : vector<1x8x32xf32> to vector<8x32xf32>
    %100 = vector.shape_cast %97 : vector<8x32xf32> to vector<1x8x32xf32>
    tpu.vector_store %arg4[%c0_9, %c0_10, %c0_11], %100 {strides = array<i32>} : memref<1x8x32xf32, #tpu.memory_space<vmem>>, vector<1x8x32xf32>,
    return
  }
  func.func @transform_0(%arg0: i32) -> (i32, i32, i32) {
    %c0_i32 = arith.constant 0 : i32
    %c0_i32_0 = arith.constant 0 : i32
    %c0_i32_1 = arith.constant 0 : i32
    return %arg0, %c0_i32, %c0_i32_0 : i32, i32, i32
  }
  func.func @transform_1(%arg0: i32) -> (i32, i32, i32) {
    %c0_i32 = arith.constant 0 : i32
    %c0_i32_0 = arith.constant 0 : i32
    %c0_i32_1 = arith.constant 0 : i32
    %c0_i32_2 = arith.constant 0 : i32
    return %c0_i32, %c0_i32_0, %c0_i32_1 : i32, i32, i32
  }
  func.func @transform_2(%arg0: i32) -> (i32, i32) {
    %c0_i32 = arith.constant 0 : i32
    %c0_i32_0 = arith.constant 0 : i32
    %c0_i32_1 = arith.constant 0 : i32
    return %c0_i32, %c0_i32_0 : i32, i32
  }
  func.func @transform_3(%arg0: i32) -> (i32, i32, i32) {
    %c0_i32 = arith.constant 0 : i32
    %c0_i32_0 = arith.constant 0 : i32
    %c0_i32_1 = arith.constant 0 : i32
    return %arg0, %c0_i32, %c0_i32_0 : i32, i32, i32
  }
}

</mosaic_0001>

<llo_original>
// kernel: cnn_feature_extractor.1
$region0: #{cnn_feature_extractor.1}
  #allocation0 [shape = 'u32[]', space=smem, size = 0x4, offset = 0x4, fixed_abs, tag = 'smem constant byte address 0x4 - core index']
  #allocation1 [shape = 'u32[144,128]{1,0:T(1,128)}', space=vmem, size = 0x12000, scoped, tag = 'internal scratch']
  %s0 = inlined_call_operand.vmem [shape: f32[2,8,4], index: 0, kind: input, shape index: {}]
  %s1 = inlined_call_operand.vmem [shape: f32[3,4,32], index: 1, kind: input, shape index: {}]
  %s2 = inlined_call_operand.vmem [shape: f32[1,32], index: 2, kind: input, shape index: {}]
  %s3 = inlined_call_operand.hbm [shape: f32[2,8,32], index: 3, kind: output, shape index: {}]
  %s4 = sld [smem:[#allocation0]]
  $region45: #{cnn_feature_extractor.1} parent=0
    _
  %s6 = ssub.s32 1, %s4
  %s7 = scalar_select 0, %s6, %s4
  $region1: #{cnn_feature_extractor.1} parent=0
    #allocation2 [shape = 'u8[8192]{0}', space=vmem, size = 0x2000, scoped, tag = 'output window, operand 0']
    #allocation3 [shape = 's32[2]{0}', space=sflag, size = 0x8, scoped, tag = 'scoped memory for cnn_feature_extractor.1']
    %8 = vsyncpa [#allocation3], 0
    %s9 = scalar_lea.sflag [#allocation3], 1
    %10 = vsyncpa %s9, 0
    loop: start=0, step=1, limit=4
    $region2: #{cnn_feature_extractor.1} parent=1 // loop_pre_header
      _
    $region3: #{cnn_feature_extractor.1} parent=1 // loop_header
      %s12 = sphi 0, %s16
      %p13 = scmp.ge.s32.totalorder %s12, 4
      %s22 = sphi 0, %s24
      %s25 = sphi 0, %s22
      %s26 = sphi 0, %s25
      %s42 = sphi 0, %s26
      %s46 = sphi 0, %s46
      %s48 = sphi 0, %s46
      %s49 = sphi 0, %s48
      %s63 = sphi 0, %s49
      %s67 = sphi 0, %s67
      %s69 = sphi 0, %s67
      %s70 = sphi 0, %s69
      %s84 = sphi 0, %s70
      %s90 = sphi 0, %s92
      %s93 = sphi 0, %s90
      %s94 = sphi 0, %s93
      %s110 = sphi 0, %s94
    $region4: #{cnn_feature_extractor.1} parent=1 // loop_header_branch
      %15 = sbr.rel (%p13) target = $region8
    $region5: #{cnn_feature_extractor.1} parent=1 // loop_body
      %s17 = ssub.s32 %s12, 1
      %s18 = ssub.s32 %s12, 2
      %s19 = sadd.s32 %s12, 1
      %s20 = ssub.s32 %s12, %s19
      %p21 = scmp.eq.s32.totalorder %s20, 0
      %s23 = sadd.s32 %s22, 1
      %s24 = scalar_select %p21, %s22, %s23
      %p27 = pneg %p21
      %p28 = scmp.eq.s32.totalorder %s12, 1
      %p29 = por %p27, %p28
      %p30 = scmp.ne.s32.totalorder %s22, %s25
      %p31 = scmp.eq.s32.totalorder %s12, 0
      %p32 = por %p30, %p31
      %p33 = scmp.ne.s32.totalorder %s22, %s25
      %p34 = scmp.eq.s32.totalorder %s17, 1
      %p35 = por %p33, %p34
      %p36 = scmp.ne.s32.totalorder %s25, %s26
      %p37 = scmp.eq.s32.totalorder %s17, 0
      %p38 = por %p36, %p37
      %p39 = scmp.ne.s32.totalorder %s25, %s26
      %p40 = scmp.eq.s32.totalorder %s18, 1
      %p41 = por %p39, %p40
      %p43 = scmp.ne.s32.totalorder %s26, %s42
      %p44 = scmp.eq.s32.totalorder %s18, 0
      %p45 = por %p43, %p44
      %s47 = sadd.s32 %s46, 1
      %p50 = scmp.eq.s32.totalorder %s12, 1
      %p51 = scmp.ne.s32.totalorder %s46, %s48
      %p52 = scmp.eq.s32.totalorder %s12, 0
      %p53 = por %p51, %p52
      %p54 = scmp.ne.s32.totalorder %s46, %s48
      %p55 = scmp.eq.s32.totalorder %s17, 1
      %p56 = por %p54, %p55
      %p57 = scmp.ne.s32.totalorder %s48, %s49
      %p58 = scmp.eq.s32.totalorder %s17, 0
      %p59 = por %p57, %p58
      %p60 = scmp.ne.s32.totalorder %s48, %s49
      %p61 = scmp.eq.s32.totalorder %s18, 1
      %p62 = por %p60, %p61
      %p64 = scmp.ne.s32.totalorder %s49, %s63
      %p65 = scmp.eq.s32.totalorder %s18, 0
      %p66 = por %p64, %p65
      %s68 = sadd.s32 %s67, 1
      %p71 = scmp.eq.s32.totalorder %s12, 1
      %p72 = scmp.ne.s32.totalorder %s67, %s69
      %p73 = scmp.eq.s32.totalorder %s12, 0
      %p74 = por %p72, %p73
      %p75 = scmp.ne.s32.totalorder %s67, %s69
      %p76 = scmp.eq.s32.totalorder %s17, 1
      %p77 = por %p75, %p76
      %p78 = scmp.ne.s32.totalorder %s69, %s70
      %p79 = scmp.eq.s32.totalorder %s17, 0
      %p80 = por %p78, %p79
      %p81 = scmp.ne.s32.totalorder %s69, %s70
      %p82 = scmp.eq.s32.totalorder %s18, 1
      %p83 = por %p81, %p82
      %p85 = scmp.ne.s32.totalorder %s70, %s84
      %p86 = scmp.eq.s32.totalorder %s18, 0
      %p87 = por %p85, %p86
      %s88 = ssub.s32 %s12, %s19
      %p89 = scmp.eq.s32.totalorder %s88, 0
      %s91 = sadd.s32 %s90, 1
      %s92 = scalar_select %p89, %s90, %s91
      %p95 = pneg %p89
      %p96 = scmp.eq.s32.totalorder %s12, 1
      %p97 = por %p95, %p96
      %p98 = scmp.ne.s32.totalorder %s90, %s93
      %p99 = scmp.eq.s32.totalorder %s12, 0
      %p100 = por %p98, %p99
      %p101 = scmp.ne.s32.totalorder %s90, %s93
      %p102 = scmp.eq.s32.totalorder %s17, 1
      %p103 = por %p101, %p102
      %p104 = scmp.ne.s32.totalorder %s93, %s94
      %p105 = scmp.eq.s32.totalorder %s17, 0
      %p106 = por %p104, %p105
      %p107 = scmp.ne.s32.totalorder %s93, %s94
      %p108 = scmp.eq.s32.totalorder %s18, 1
      %p109 = por %p107, %p108
      %p111 = scmp.ne.s32.totalorder %s94, %s110
      %p112 = scmp.eq.s32.totalorder %s18, 0
      %p113 = por %p111, %p112
      %p114 = scmp.le.s32.totalorder 1, %s12
      %p115 = scmp.lt.s32.totalorder %s12, 3
      %p116 = pnand %p114, %p115
      %p117 = pneg %p116
      // Predicated region
      $region9: #{cnn_feature_extractor.1} parent=5 // pred_check
        _
      $region10: #{cnn_feature_extractor.1} parent=5 // pred_check_branch
        %119 = sbr.rel (%p116) target = $region12
      $region11: #{cnn_feature_extractor.1} parent=5 // pred_region
        %s120 = ssub.s32 %s12, 1
        // Predicated region
        $region13: #{cnn_feature_extractor.1} parent=11 // pred_check
          %p121 = pneg %p59
        $region14: #{cnn_feature_extractor.1} parent=11 // pred_check_branch
          %123 = sbr.rel (%p121) target = $region16
        $region15: #{cnn_feature_extractor.1} parent=11 // pred_region
          _
        $region16: #{cnn_feature_extractor.1} parent=11 // pred_fallthru
          _
        // Predicated region
        $region17: #{cnn_feature_extractor.1} parent=11 // pred_check
          %p124 = pneg %p80
        $region18: #{cnn_feature_extractor.1} parent=11 // pred_check_branch
          %126 = sbr.rel (%p124) target = $region20
        $region19: #{cnn_feature_extractor.1} parent=11 // pred_region
          _
        $region20: #{cnn_feature_extractor.1} parent=11 // pred_fallthru
          _
      $region12: #{cnn_feature_extractor.1} parent=5 // pred_fallthru
        _
      %p127 = scmp.lt.s32.totalorder %s12, 2
      // Predicated region
      $region21: #{cnn_feature_extractor.1} parent=5 // pred_check
        %p128 = pneg %p127
      $region22: #{cnn_feature_extractor.1} parent=5 // pred_check_branch
        %130 = sbr.rel (%p128) target = $region24
      $region23: #{cnn_feature_extractor.1} parent=5 // pred_region
        // Predicated region
        $region25: #{cnn_feature_extractor.1} parent=23 // pred_check
          %p131 = pneg %p32
        $region26: #{cnn_feature_extractor.1} parent=23 // pred_check_branch
          %133 = sbr.rel (%p131) target = $region28
        $region27: #{cnn_feature_extractor.1} parent=23 // pred_region
          %p134 = scmp.lt.s32.totalorder %s12, 1
          %s135 = scalar_select %p134, %s12, 1
          %s136 = smul.addr %s135, 8
          %s137 = scalar_lea.vmem %s0, %s136
        $region28: #{cnn_feature_extractor.1} parent=23 // pred_fallthru
          _
      $region24: #{cnn_feature_extractor.1} parent=5 // pred_fallthru
        _
      %p138 = scmp.le.s32.totalorder 1, %s12
      %p139 = scmp.lt.s32.totalorder %s12, 3
      %p140 = pnand %p138, %p139
      %p141 = pneg %p140
      // Predicated region
      $region29: #{cnn_feature_extractor.1} parent=5 // pred_check
        _
      $region30: #{cnn_feature_extractor.1} parent=5 // pred_check_branch
        %143 = sbr.rel (%p140) target = $region32
      $region31: #{cnn_feature_extractor.1} parent=5 // pred_region
        %s144 = ssub.s32 %s12, 1
        %p145 = scmp.lt.s32.totalorder %s17, 1
        %s146 = scalar_select %p145, %s17, 1
        %s147 = smul.addr %s146, 8
        %s148 = scalar_lea.vmem %s0, %s147
        %p149 = pneg %p38
        %p150 = pneg %p35
        %p151 = pneg %p59
        %p152 = pneg %p56
        %p153 = pneg %p80
        %p154 = pneg %p77
        %p155 = pneg %p106
        %p156 = pneg %p103
        %s157 = sand.u32 %s93, 1
        %s158 = scalar_lea.sflag [#allocation3], %s157
        %s159 = sand.u32 %s93, 1
        %s160 = smul.addr %s159, 8
        %s161 = scalar_lea.vmem [#allocation2], %s160
        %p162 = scmp.lt.s32.totalorder %s17, 1
        %s163 = scalar_select %p162, %s17, 1
        %s164 = smul.addr %s163, 8
        %s165 = scalar_lea.vmem %s0, %s164
        %v166 = vld [vmem:[%s165] sm:$0xff]
        %v167 = vld [vmem:[%s1] sm:$0xf]
        %v168 = vld [vmem:[%s1 + $0x4] sm:$0xf]
        %v169 = vld [vmem:[%s1 + $0x8] sm:$0xf]
        %v171 = vrot.slane %v166, 7
        %vm173 = vcmask 1040384
        %v174 = vsel %vm173, 0.0, %v171
        %v175 = vrot.slane %v166, 1
        %vm177 = vcmask 1046528
        %v178 = vsel %vm177, %v175, 0.0
        %180 = vset.pattern.permute.xlu0 0
        %181 = vperm.xlu0 %180, %v174
        %v182 = vpop.permute.xlu0 %181
        %v184 = vlaneseq
        %v185 = vshrl.u32 %v184, 7
        %v186 = vsub.s32 0, %v185
        %v187 = vrot.slane %v167, %v186
        %v188 = vmul.f32 %v182, %v187
        %v189 = vadd.f32 %v188, 0.0
        %190 = vset.pattern.permute.xlu0 1
        %191 = vperm.xlu0 %190, %v174
        %v192 = vpop.permute.xlu0 %191
        %v194 = vlaneseq
        %v195 = vshrl.u32 %v194, 7
        %v196 = vsub.s32 1, %v195
        %v197 = vrot.slane %v167, %v196
        %v198 = vmul.f32 %v192, %v197
        %v199 = vadd.f32 %v189, %v198
        %200 = vset.pattern.permute.xlu0 2
        %201 = vperm.xlu0 %200, %v174
        %v202 = vpop.permute.xlu0 %201
        %v204 = vlaneseq
        %v205 = vshrl.u32 %v204, 7
        %v206 = vsub.s32 2, %v205
        %v207 = vrot.slane %v167, %v206
        %v208 = vmul.f32 %v202, %v207
        %v209 = vadd.f32 %v199, %v208
        %210 = vset.pattern.permute.xlu0 3
        %211 = vperm.xlu0 %210, %v174
        %v212 = vpop.permute.xlu0 %211
        %v214 = vlaneseq
        %v215 = vshrl.u32 %v214, 7
        %v216 = vsub.s32 3, %v215
        %v217 = vrot.slane %v167, %v216
        %v218 = vmul.f32 %v212, %v217
        %v219 = vadd.f32 %v209, %v218
        %220 = vset.pattern.permute.xlu0 0
        %221 = vperm.xlu0 %220, %v166
        %v222 = vpop.permute.xlu0 %221
        %v224 = vlaneseq
        %v225 = vshrl.u32 %v224, 7
        %v226 = vsub.s32 0, %v225
        %v227 = vrot.slane %v168, %v226
        %v228 = vmul.f32 %v222, %v227
        %v229 = vadd.f32 %v219, %v228
        %230 = vset.pattern.permute.xlu0 1
        %231 = vperm.xlu0 %230, %v166
        %v232 = vpop.permute.xlu0 %231
        %v234 = vlaneseq
        %v235 = vshrl.u32 %v234, 7
        %v236 = vsub.s32 1, %v235
        %v237 = vrot.slane %v168, %v236
        %v238 = vmul.f32 %v232, %v237
        %v239 = vadd.f32 %v229, %v238
        %240 = vset.pattern.permute.xlu0 2
        %241 = vperm.xlu0 %240, %v166
        %v242 = vpop.permute.xlu0 %241
        %v244 = vlaneseq
        %v245 = vshrl.u32 %v244, 7
        %v246 = vsub.s32 2, %v245
        %v247 = vrot.slane %v168, %v246
        %v248 = vmul.f32 %v242, %v247
        %v249 = vadd.f32 %v239, %v248
        %250 = vset.pattern.permute.xlu0 3
        %251 = vperm.xlu0 %250, %v166
        %v252 = vpop.permute.xlu0 %251
        %v254 = vlaneseq
        %v255 = vshrl.u32 %v254, 7
        %v256 = vsub.s32 3, %v255
        %v257 = vrot.slane %v168, %v256
        %v258 = vmul.f32 %v252, %v257
        %v259 = vadd.f32 %v249, %v258
        %261 = vset.pattern.permute.xlu0 0
        %262 = vperm.xlu0 %261, %v178
        %v263 = vpop.permute.xlu0 %262
        %v265 = vlaneseq
        %v266 = vshrl.u32 %v265, 7
        %v267 = vsub.s32 0, %v266
        %v268 = vrot.slane %v169, %v267
        %v269 = vmul.f32 %v263, %v268
        %v270 = vadd.f32 %v259, %v269
        %271 = vset.pattern.permute.xlu0 1
        %272 = vperm.xlu0 %271, %v178
        %v273 = vpop.permute.xlu0 %272
        %v275 = vlaneseq
        %v276 = vshrl.u32 %v275, 7
        %v277 = vsub.s32 1, %v276
        %v278 = vrot.slane %v169, %v277
        %v279 = vmul.f32 %v273, %v278
        %v280 = vadd.f32 %v270, %v279
        %281 = vset.pattern.permute.xlu0 2
        %282 = vperm.xlu0 %281, %v178
        %v283 = vpop.permute.xlu0 %282
        %v285 = vlaneseq
        %v286 = vshrl.u32 %v285, 7
        %v287 = vsub.s32 2, %v286
        %v288 = vrot.slane %v169, %v287
        %v289 = vmul.f32 %v283, %v288
        %v290 = vadd.f32 %v280, %v289
        %291 = vset.pattern.permute.xlu0 3
        %292 = vperm.xlu0 %291, %v178
        %v293 = vpop.permute.xlu0 %292
        %v295 = vlaneseq
        %v296 = vshrl.u32 %v295, 7
        %v297 = vsub.s32 3, %v296
        %v298 = vrot.slane %v169, %v297
        %v299 = vmul.f32 %v293, %v298
        %v300 = vadd.f32 %v290, %v299
        %v301 = vld [vmem:[%s2] sm:$0x1]
        %v303 = vlaneseq
        %v304 = vshrl.u32 %v303, 7
        %v305 = vsub.s32 0, %v304
        %v306 = vrot.slane %v301, %v305
        %v308 = vadd.f32 %v300, %v306
        %v309 = vmax.f32 %v308, 0.0
        %vm310 = vcmask 261120
        %311 = vst.msk [vmem:[%s161] sm:$0xff] %vm310, %v309
        %s312 = sand.u32 %s93, 1
        %s313 = scalar_lea.sflag [#allocation3], %s312
        %s314 = sand.u32 %s93, 1
        %s315 = smul.addr %s314, 8
        %s316 = scalar_lea.vmem [#allocation2], %s315
        // Predicated region
        $region33: #{cnn_feature_extractor.1} parent=31 // pred_check
          %p317 = pneg %p103
        $region34: #{cnn_feature_extractor.1} parent=31 // pred_check_branch
          %319 = sbr.rel (%p317) target = $region36
        $region35: #{cnn_feature_extractor.1} parent=31 // pred_region
          %s321 = ssub.s32 128, 128
          %322 = vsyncadd %s313, %s321
          %s323 = smul.addr %s17, 128
          %s324 = scalar_lea.hbm %s3, %s323
          %s326 = sshll.u32 %s316, 4
          %s327 = int_to_ptr.vmem [resolvable:$true] %s326
          %329 = dma.vmem_to_hbm [thread:$0]  %s327, 128, %s324, %s313
        $region36: #{cnn_feature_extractor.1} parent=31 // pred_fallthru
          _
      $region32: #{cnn_feature_extractor.1} parent=5 // pred_fallthru
        _
      %p330 = scmp.le.s32.totalorder 2, %s12
      // Predicated region
      $region37: #{cnn_feature_extractor.1} parent=5 // pred_check
        %p331 = pneg %p330
      $region38: #{cnn_feature_extractor.1} parent=5 // pred_check_branch
        %333 = sbr.rel (%p331) target = $region40
      $region39: #{cnn_feature_extractor.1} parent=5 // pred_region
        %s334 = ssub.s32 %s12, 2
        // Predicated region
        $region41: #{cnn_feature_extractor.1} parent=39 // pred_check
          %p335 = pneg %p109
        $region42: #{cnn_feature_extractor.1} parent=39 // pred_check_branch
          %337 = sbr.rel (%p335) target = $region44
        $region43: #{cnn_feature_extractor.1} parent=39 // pred_region
          %s338 = sand.u32 %s94, 1
          %s339 = scalar_lea.sflag [#allocation3], %s338
          %s340 = sand.u32 %s94, 1
          %s341 = smul.addr %s340, 8
          %s342 = scalar_lea.vmem [#allocation2], %s341
          %343 = dma.done %s339, 128
        $region44: #{cnn_feature_extractor.1} parent=39 // pred_fallthru
          _
      $region40: #{cnn_feature_extractor.1} parent=5 // pred_fallthru
        _
    $region6: #{cnn_feature_extractor.1} parent=1 // loop_footer
      %s16 = sadd.s32 1, %s12
    $region7: #{cnn_feature_extractor.1} parent=1 // loop_footer_branch
      %11 = sbr.rel target = $region3
    $region8: #{cnn_feature_extractor.1} parent=1 // loop_exit
      _
    %344 = vsyncpa [#allocation3], 1
    %s345 = scalar_lea.sflag [#allocation3], 1
    %346 = vsyncpa %s345, 1

</llo_original>
